<compile_context>
chip_gen: v7x
topology: tpu7x:2x2x1
jax: 0.10.0
libtpu: 0.0.40
codegen_flags: <defaults>
</compile_context>

<pallas_src>
import functools

import numpy as np
import jax
import jax.numpy as jnp
from jax import lax
from jax.experimental import pallas as pl
from jax.experimental.pallas import tpu as pltpu


def _round_up(v, m):
    return (v + m - 1) // m * m


def _cond_mm_kernel(x_ref, wflat_ref, wsum_ref, out_ref, *,
                    depth, n_leaf, d_out_p, sel_chunk):
    """One batch tile: routing matmul + one big leaf matmul + vectorized tree walk +
    chunked leaf selection with lane-dense stores."""
    x = x_ref[...]                                    # (TILE_B, D_in_p) f32
    tile_b = x.shape[0]

    # Leaf logits: single big MXU matmul, bf16 operands, f32 accumulation.
    all_logits = jnp.dot(
        x.astype(jnp.bfloat16), wflat_ref[...],
        preferred_element_type=jnp.float32,
    )                                                 # (TILE_B, n_leaf * d_out_p)

    # Routing: vectorized tree walk over the depth-1 internal levels only.
    if depth > 1:
        # Score of every internal node for every row: logit.sum() == x @ colsum(W).
        # Kept f32 / HIGHEST so the sign-based branch bits stay stable vs. reference.
        scores = jnp.dot(
            x, wsum_ref[...],
            preferred_element_type=jnp.float32,
            precision=lax.Precision.HIGHEST,
        )                                             # (TILE_B, n_internal)
        node_iota = lax.broadcasted_iota(jnp.int32, scores.shape, 1)
        node = jnp.zeros((tile_b, 1), jnp.int32)
        for _ in range(depth - 1):                    # small compile-time constant
            picked = jnp.sum(
                jnp.where(node_iota == node, scores, jnp.zeros_like(scores)),
                axis=-1, keepdims=True)               # (TILE_B, 1)
            direction = (picked > 0.0).astype(jnp.int32)   # ties (==0) go left
            node = 2 * node + 1 + direction
        leaf = node - (n_leaf - 1)                    # leaf index in [0, n_leaf)
    else:
        leaf = jnp.zeros((tile_b, 1), jnp.int32)

    # Chunked selection: keeps the running accumulator in vregs and stores each
    # lane-dense column block exactly once.
    for start in range(0, d_out_p, sel_chunk):
        width = min(sel_chunk, d_out_p - start)       # multiple of 128
        out = all_logits[:, start:start + width]      # leaf 0 slab
        for n in range(1, n_leaf):
            off = n * d_out_p + start
            out = jnp.where(leaf == n, all_logits[:, off:off + width], out)
        out_ref[:, start:start + width] = out.astype(out_ref.dtype)


def pack_weights(weights, depth):
    """Init-time weight repack (hoisted out of the per-call jit path).

    Returns:
      w_flat: (D_in_p, n_leaf * D_out_p) bf16 - leaf (last-level) matrices packed side
              by side, lane-dense (D_out zero-padded to a multiple of 128).
      w_sum:  (D_in_p, max(n_internal, 1)) f32 - per-internal-node column sums, so
              x @ w_sum[:, n] == (x @ W[n]).sum() (routing scores).
    """
    weights = jnp.asarray(weights, jnp.float32)
    n_nodes, d_in, d_out = weights.shape
    assert n_nodes == 2 ** depth - 1, "expected 2**depth - 1 weight matrices"
    n_leaf = 2 ** (depth - 1)
    n_internal = n_leaf - 1

    d_in_p = _round_up(d_in, 128)     # lane-dense MXU contraction dim
    d_out_p = _round_up(d_out, 128)   # lane-dense output columns

    # Only last-level (leaf) matrices can ever be returned -> pack only those.
    w_leaf = weights[n_internal:]                                       # (n_leaf, D_in, D_out)
    w_leaf = jnp.pad(w_leaf, ((0, 0), (0, d_in_p - d_in), (0, d_out_p - d_out)))
    w_flat = (jnp.transpose(w_leaf, (1, 0, 2))
              .reshape(d_in_p, n_leaf * d_out_p)
              .astype(jnp.bfloat16))

    # Only internal-level nodes contribute branch decisions -> routing colsums for them.
    if n_internal > 0:
        colsum = jnp.sum(weights[:n_internal], axis=-1)                 # (n_internal, D_in)
        colsum = jnp.pad(colsum, ((0, 0), (0, d_in_p - d_in)))
        w_sum = jnp.transpose(colsum, (1, 0))                           # (D_in_p, n_internal)
    else:                                                               # depth == 1: dummy column
        w_sum = jnp.zeros((d_in_p, 1), jnp.float32)
    return w_flat, w_sum


def cond_mm_packed(x, w_flat, w_sum, *, depth, d_out, tile_b=None, sel_chunk=512):
    """x: (B, D_in) f32; (w_flat, w_sum) from pack_weights -> (B, d_out) f32."""
    batch, d_in = x.shape
    n_leaf = 2 ** (depth - 1)
    d_in_p = w_flat.shape[0]
    d_out_p = w_flat.shape[1] // n_leaf
    n_int_eff = w_sum.shape[1]
    assert d_in <= d_in_p and d_out <= d_out_p
    assert d_out == d_in, "module semantics require output_dim == input_dim"

    x = x.astype(jnp.float32)

    # 256-row tiles fill the 2x256^2 MXU on v6e/v7x and amortize per-grid-step overhead;
    # small batches use one multiple-of-8 tile.
    if tile_b is None:
        tile_b = min(256, _round_up(batch, 8))
    batch_p = _round_up(batch, tile_b)
    x_p = jnp.pad(x, ((0, batch_p - batch), (0, d_in_p - d_in)))

    grid = (batch_p // tile_b,)
    kernel = functools.partial(_cond_mm_kernel, depth=depth, n_leaf=n_leaf,
                               d_out_p=d_out_p, sel_chunk=sel_chunk)

    flops = 2 * batch_p * d_in_p * (n_leaf * d_out_p + n_int_eff)
    bytes_accessed = (4 * x_p.size + 2 * w_flat.size + 4 * w_sum.size
                      + 4 * batch_p * d_out_p)

    # Weights are grid-invariant and kept fully VMEM-resident (single copy); only the
    # x / out tiles are double-buffered.  Budget VMEM explicitly.
    vmem_need = (2 * w_flat.size + 4 * w_sum.size
                 + 2 * tile_b * d_in_p * 4           # double-buffered x tiles
                 + 2 * tile_b * d_out_p * 4          # double-buffered out tiles
                 + tile_b * (n_leaf * d_out_p + n_int_eff + sel_chunk) * 4)  # temporaries
    vmem_limit = int(min(max(int(vmem_need * 1.2) + (2 << 20), 32 << 20), 96 << 20))

    out_p = pl.pallas_call(
        kernel,
        out_shape=jax.ShapeDtypeStruct((batch_p, d_out_p), jnp.float32),
        grid_spec=pltpu.PrefetchScalarGridSpec(
            num_scalar_prefetch=0,
            grid=grid,
            in_specs=[
                pl.BlockSpec((tile_b, d_in_p), lambda b: (b, 0)),     # x tile (pipelined)
                pl.BlockSpec(memory_space=pltpu.MemorySpace.VMEM),    # leaf weights (resident)
                pl.BlockSpec(memory_space=pltpu.MemorySpace.VMEM),    # routing colsums (resident)
            ],
            out_specs=pl.BlockSpec((tile_b, d_out_p), lambda b: (b, 0)),
        ),
        compiler_params=pltpu.CompilerParams(
            dimension_semantics=("parallel",),       # megacore when grid >= 2 (v7x)
            vmem_limit_bytes=vmem_limit,
        ),
        cost_estimate=pl.CostEstimate(
            flops=flops, transcendentals=0, bytes_accessed=bytes_accessed),
    )(x_p, w_flat, w_sum)

    return out_p[:batch, :d_out]


def conditional_matrix_multiplication(x, weights, depth, *, tile_b=None):
    """Convenience path: packs weights on the fly (prefer pack_weights once at init)."""
    w_flat, w_sum = pack_weights(weights, depth)
    return cond_mm_packed(x, w_flat, w_sum, depth=depth,
                          d_out=weights.shape[2], tile_b=tile_b)


def _reference(x, weights, depth):
    """Pure NumPy replica of the PyTorch forward."""
    x = np.asarray(x, np.float32)
    w = np.asarray(weights, np.float32)
    batch = x.shape[0]
    out = np.zeros((batch, w.shape[2]), np.float32)
    for i in range(batch):
        node = 0
        logit = np.zeros((w.shape[2],), np.float32)
        for _ in range(depth):
            logit = x[i] @ w[node]
            node = 2 * node + 1 + int(logit.sum() > 0)
            if node >= w.shape[0]:
                break
        out[i] = logit
    return out


if __name__ == "__main__":
    input_dim = 32
    output_dim = 32     # must equal input_dim (module assigns logit into a (B, input_dim) buffer)
    depth = 3
    batch = 16

    key = jax.random.PRNGKey(0)
    kx, kw = jax.random.split(key)
    x = jax.random.normal(kx, (batch, input_dim), dtype=jnp.float32)
    weights = jax.random.normal(
        kw, (2 ** depth - 1, input_dim, output_dim), dtype=jnp.float32)

    # Init-time repack, outside the jitted hot path.
    w_flat, w_sum = jax.block_until_ready(pack_weights(weights, depth))

    fn = jax.jit(functools.partial(cond_mm_packed, depth=depth, d_out=output_dim,
                                   tile_b=8))        # tile_b=8 -> grid of 2 at batch=16
    out = jax.block_until_ready(fn(x, w_flat, w_sum))

    ref = _reference(x, weights, depth)
    # Leaf matmul runs in bf16 on the MXU (f32 accumulation); routing is f32/HIGHEST, so
    # rows follow the reference's tree path and values agree to bf16-level tolerance.
    np.testing.assert_allclose(np.asarray(out), ref, rtol=1e-2, atol=1e-1)
    print("KERNEL_OK")
</pallas_src>

<mosaic_0001>
module attributes {stable_mosaic.version = 11 : i64} {
  func.func @_cond_mm_kernel(%arg0: i32, %arg1: memref<8x128xf32, #tpu.memory_space<vmem>>, %arg2: memref<128x512xbf16, #tpu.memory_space<vmem>>, %arg3: memref<128x3xf32, #tpu.memory_space<vmem>>, %arg4: memref<8x128xf32, #tpu.memory_space<vmem>>) attributes {dimension_semantics = [#tpu.dimension_semantics<parallel>], iteration_bounds = array<i64: 2>, scalar_prefetch = 0 : i64, scratch_operands = 0 : i64, tpu.core_type = #tpu.core_type<tc>, window_params = [{transform_indices = @transform_0, window_bounds = array<i64: 8, 128>}, {pipeline_mode = #tpu.pipeline_mode<synchronous>, transform_indices = @transform_1, window_bounds = array<i64: 128, 512>}, {pipeline_mode = #tpu.pipeline_mode<synchronous>, transform_indices = @transform_2, window_bounds = array<i64: 128, 3>}, {transform_indices = @transform_3, window_bounds = array<i64: 8, 128>}]} {
    %c0 = arith.constant 0 : index
    %c0_0 = arith.constant 0 : index
    %0 = vector.load %arg1[%c0, %c0_0] : memref<8x128xf32, #tpu.memory_space<vmem>>, vector<8x128xf32>
    %1 = arith.truncf %0 : vector<8x128xf32> to vector<8x128xbf16>
    %c0_1 = arith.constant 0 : index
    %c0_2 = arith.constant 0 : index
    %2 = vector.load %arg2[%c0_1, %c0_2] : memref<128x512xbf16, #tpu.memory_space<vmem>>, vector<128x512xbf16>
    %cst = arith.constant dense<0.000000e+00> : vector<8x512xf32>
    %3 = tpu.matmul %1, %2, %cst {dimension_numbers = #tpu.dot_dimension_numbers<[1], [0], [0], [1], [0, 0, 1, 1], [], []>} : vector<8x128xbf16>, vector<128x512xbf16>, vector<8x512xf32> -> vector<8x512xf32>
    %c0_3 = arith.constant 0 : index
    %c0_4 = arith.constant 0 : index
    %4 = vector.load %arg3[%c0_3, %c0_4] : memref<128x3xf32, #tpu.memory_space<vmem>>, vector<128x3xf32>
    %cst_5 = arith.constant dense<0.000000e+00> : vector<8x3xf32>
    %5 = tpu.matmul %0, %4, %cst_5 {dimension_numbers = #tpu.dot_dimension_numbers<[1], [0], [0], [1], [0, 0, 1, 1], [], []>, precision = #tpu.contract_precision<fp32>} : vector<8x128xf32>, vector<128x3xf32>, vector<8x3xf32> -> vector<8x3xf32>
    %6 = tpu.iota {dimensions = array<i32: 1>} : vector<8x3xi32>
    %c0_i32 = arith.constant 0 : i32
    %7 = vector.broadcast %c0_i32 : i32 to vector<8x1xi32>
    %8 = vector.broadcast %7 : vector<8x1xi32> to vector<8x3xi32>
    %9 = arith.cmpi eq, %6, %8 : vector<8x3xi32>
    %cst_6 = arith.constant 0.000000e+00 : f32
    %10 = vector.broadcast %cst_6 : f32 to vector<8x3xf32>
    %11 = arith.select %9, %5, %10 : vector<8x3xi1>, vector<8x3xf32>
    %cst_7 = arith.constant dense<0.000000e+00> : vector<8xf32>
    %12 = vector.multi_reduction <add>, %11, %cst_7 [1] : vector<8x3xf32> to vector<8xf32>
    %13 = vector.shape_cast %12 : vector<8xf32> to vector<8x1xf32>
    %cst_8 = arith.constant 0.000000e+00 : f32
    %14 = vector.broadcast %cst_8 : f32 to vector<8x1xf32>
    %15 = arith.cmpf ogt, %13, %14 : vector<8x1xf32>
    %16 = arith.extui %15 : vector<8x1xi1> to vector<8x1xi32>
    %c2_i32 = arith.constant 2 : i32
    %17 = vector.broadcast %c2_i32 : i32 to vector<8x1xi32>
    %18 = arith.muli %17, %7 : vector<8x1xi32>
    %c1_i32 = arith.constant 1 : i32
    %19 = vector.broadcast %c1_i32 : i32 to vector<8x1xi32>
    %20 = arith.addi %18, %19 : vector<8x1xi32>
    %21 = arith.addi %20, %16 : vector<8x1xi32>
    %22 = vector.broadcast %21 : vector<8x1xi32> to vector<8x3xi32>
    %23 = arith.cmpi eq, %6, %22 : vector<8x3xi32>
    %cst_9 = arith.constant 0.000000e+00 : f32
    %24 = vector.broadcast %cst_9 : f32 to vector<8x3xf32>
    %25 = arith.select %23, %5, %24 : vector<8x3xi1>, vector<8x3xf32>
    %cst_10 = arith.constant dense<0.000000e+00> : vector<8xf32>
    %26 = vector.multi_reduction <add>, %25, %cst_10 [1] : vector<8x3xf32> to vector<8xf32>
    %27 = vector.shape_cast %26 : vector<8xf32> to vector<8x1xf32>
    %cst_11 = arith.constant 0.000000e+00 : f32
    %28 = vector.broadcast %cst_11 : f32 to vector<8x1xf32>
    %29 = arith.cmpf ogt, %27, %28 : vector<8x1xf32>
    %30 = arith.extui %29 : vector<8x1xi1> to vector<8x1xi32>
    %c2_i32_12 = arith.constant 2 : i32
    %31 = vector.broadcast %c2_i32_12 : i32 to vector<8x1xi32>
    %32 = arith.muli %31, %21 : vector<8x1xi32>
    %c1_i32_13 = arith.constant 1 : i32
    %33 = vector.broadcast %c1_i32_13 : i32 to vector<8x1xi32>
    %34 = arith.addi %32, %33 : vector<8x1xi32>
    %35 = arith.addi %34, %30 : vector<8x1xi32>
    %c3_i32 = arith.constant 3 : i32
    %36 = vector.broadcast %c3_i32 : i32 to vector<8x1xi32>
    %37 = arith.subi %35, %36 : vector<8x1xi32>
    %38 = vector.extract_strided_slice %3 {offsets = [0, 0], sizes = [8, 128], strides = [1, 1]} : vector<8x512xf32> to vector<8x128xf32>
    %c1_i32_14 = arith.constant 1 : i32
    %39 = vector.broadcast %c1_i32_14 : i32 to vector<8x1xi32>
    %40 = arith.cmpi eq, %37, %39 : vector<8x1xi32>
    %41 = vector.extract_strided_slice %3 {offsets = [0, 128], sizes = [8, 128], strides = [1, 1]} : vector<8x512xf32> to vector<8x128xf32>
    %42 = vector.shape_cast %40 : vector<8x1xi1> to vector<8x1xi1>
    %43 = vector.broadcast %42 : vector<8x1xi1> to vector<8x128xi1>
    %44 = arith.select %43, %41, %38 : vector<8x128xi1>, vector<8x128xf32>
    %c2_i32_15 = arith.constant 2 : i32
    %45 = vector.broadcast %c2_i32_15 : i32 to vector<8x1xi32>
    %46 = arith.cmpi eq, %37, %45 : vector<8x1xi32>
    %47 = vector.extract_strided_slice %3 {offsets = [0, 256], sizes = [8, 128], strides = [1, 1]} : vector<8x512xf32> to vector<8x128xf32>
    %48 = vector.shape_cast %46 : vector<8x1xi1> to vector<8x1xi1>
    %49 = vector.broadcast %48 : vector<8x1xi1> to vector<8x128xi1>
    %50 = arith.select %49, %47, %44 : vector<8x128xi1>, vector<8x128xf32>
    %c3_i32_16 = arith.constant 3 : i32
    %51 = vector.broadcast %c3_i32_16 : i32 to vector<8x1xi32>
    %52 = arith.cmpi eq, %37, %51 : vector<8x1xi32>
    %53 = vector.extract_strided_slice %3 {offsets = [0, 384], sizes = [8, 128], strides = [1, 1]} : vector<8x512xf32> to vector<8x128xf32>
    %54 = vector.shape_cast %52 : vector<8x1xi1> to vector<8x1xi1>
    %55 = vector.broadcast %54 : vector<8x1xi1> to vector<8x128xi1>
    %56 = arith.select %55, %53, %50 : vector<8x128xi1>, vector<8x128xf32>
    %c0_17 = arith.constant 0 : index
    %c0_18 = arith.constant 0 : index
    %57 = vector.load %arg4[%c0_17, %c0_18] : memref<8x128xf32, #tpu.memory_space<vmem>>, vector<8x128xf32>
    tpu.vector_store %arg4[%c0_17, %c0_18], %56 {strides = array<i32>} : memref<8x128xf32, #tpu.memory_space<vmem>>, vector<8x128xf32>,
    return
  }
  func.func @transform_0(%arg0: i32) -> (i32, i32) {
    %c0_i32 = arith.constant 0 : i32
    %c0_i32_0 = arith.constant 0 : i32
    return %arg0, %c0_i32 : i32, i32
  }
  func.func @transform_1(%arg0: i32) -> (i32, i32) {
    %c0_i32 = arith.constant 0 : i32
    %c0_i32_0 = arith.constant 0 : i32
    %c0_i32_1 = arith.constant 0 : i32
    return %c0_i32, %c0_i32_0 : i32, i32
  }
  func.func @transform_2(%arg0: i32) -> (i32, i32) {
    %c0_i32 = arith.constant 0 : i32
    %c0_i32_0 = arith.constant 0 : i32
    %c0_i32_1 = arith.constant 0 : i32
    return %c0_i32, %c0_i32_0 : i32, i32
  }
  func.func @transform_3(%arg0: i32) -> (i32, i32) {
    %c0_i32 = arith.constant 0 : i32
    %c0_i32_0 = arith.constant 0 : i32
    return %arg0, %c0_i32 : i32, i32
  }
}

</mosaic_0001>

<llo_original>
// kernel: cond_mm_packed.1
$region0: #{cond_mm_packed.1}
  #allocation0 [shape = 'u32[]', space=smem, size = 0x4, offset = 0x4, fixed_abs, tag = 'smem constant byte address 0x4 - core index']
  #allocation1 [shape = 'u32[144,128]{1,0:T(1,128)}', space=vmem, size = 0x12000, scoped, tag = 'internal scratch']
  %s0 = inlined_call_operand.vmem [shape: f32[16,128], index: 0, kind: input, shape index: {}]
  %s1 = inlined_call_operand.hbm [shape: bf16[128,512], index: 1, kind: input, shape index: {}]
  %s2 = inlined_call_operand.vmem [shape: f32[128,3], index: 2, kind: input, shape index: {}]
  %s3 = inlined_call_operand.hbm [shape: f32[16,128], index: 3, kind: output, shape index: {}]
  %s4 = sld [smem:[#allocation0]]
  $region49: #{cond_mm_packed.1} parent=0
    _
  %s6 = ssub.s32 1, %s4
  %s7 = scalar_select 0, %s6, %s4
  $region1: #{cond_mm_packed.1} parent=0
    #allocation2 [shape = 'u8[131072]{0}', space=vmem, size = 0x20000, scoped, tag = 'input window, operand 1, single buffered']
    #allocation3 [shape = 's32[2]{0}', space=sflag, size = 0x8, scoped, tag = 'scoped memory for cond_mm_packed.1']
    #allocation4 [shape = 's32[2]{0}', space=sflag, size = 0x8, scoped, tag = 'scoped memory for cond_mm_packed.1']
    #allocation5 [shape = 'u8[8192]{0}', space=vmem, size = 0x2000, scoped, tag = 'output window, operand 0']
    %8 = vsyncpa [#allocation3], 0
    %9 = vsyncpa [#allocation4], 0
    %s10 = scalar_lea.sflag [#allocation4], 1
    %11 = vsyncpa %s10, 0
    loop: start=0, step=1, limit=4
    $region2: #{cond_mm_packed.1} parent=1 // loop_pre_header
      _
    $region3: #{cond_mm_packed.1} parent=1 // loop_header
      %s13 = sphi 0, %s17
      %p14 = scmp.ge.s32.totalorder %s13, 4
      %s23 = sphi 0, %s25
      %s26 = sphi 0, %s23
      %s27 = sphi 0, %s26
      %s43 = sphi 0, %s27
      %s47 = sphi 0, %s47
      %s49 = sphi 0, %s47
      %s50 = sphi 0, %s49
      %s64 = sphi 0, %s50
      %s68 = sphi 0, %s68
      %s70 = sphi 0, %s68
      %s71 = sphi 0, %s70
      %s85 = sphi 0, %s71
      %s91 = sphi 0, %s93
      %s94 = sphi 0, %s91
      %s95 = sphi 0, %s94
      %s111 = sphi 0, %s95
    $region4: #{cond_mm_packed.1} parent=1 // loop_header_branch
      %16 = sbr.rel (%p14) target = $region8
    $region5: #{cond_mm_packed.1} parent=1 // loop_body
      %s18 = ssub.s32 %s13, 1
      %s19 = ssub.s32 %s13, 2
      %s20 = sadd.s32 %s13, 1
      %s21 = ssub.s32 %s13, %s20
      %p22 = scmp.eq.s32.totalorder %s21, 0
      %s24 = sadd.s32 %s23, 1
      %s25 = scalar_select %p22, %s23, %s24
      %p28 = pneg %p22
      %p29 = scmp.eq.s32.totalorder %s13, 1
      %p30 = por %p28, %p29
      %p31 = scmp.ne.s32.totalorder %s23, %s26
      %p32 = scmp.eq.s32.totalorder %s13, 0
      %p33 = por %p31, %p32
      %p34 = scmp.ne.s32.totalorder %s23, %s26
      %p35 = scmp.eq.s32.totalorder %s18, 1
      %p36 = por %p34, %p35
      %p37 = scmp.ne.s32.totalorder %s26, %s27
      %p38 = scmp.eq.s32.totalorder %s18, 0
      %p39 = por %p37, %p38
      %p40 = scmp.ne.s32.totalorder %s26, %s27
      %p41 = scmp.eq.s32.totalorder %s19, 1
      %p42 = por %p40, %p41
      %p44 = scmp.ne.s32.totalorder %s27, %s43
      %p45 = scmp.eq.s32.totalorder %s19, 0
      %p46 = por %p44, %p45
      %s48 = sadd.s32 %s47, 1
      %p51 = scmp.eq.s32.totalorder %s13, 1
      %p52 = scmp.ne.s32.totalorder %s47, %s49
      %p53 = scmp.eq.s32.totalorder %s13, 0
      %p54 = por %p52, %p53
      %p55 = scmp.ne.s32.totalorder %s47, %s49
      %p56 = scmp.eq.s32.totalorder %s18, 1
      %p57 = por %p55, %p56
      %p58 = scmp.ne.s32.totalorder %s49, %s50
      %p59 = scmp.eq.s32.totalorder %s18, 0
      %p60 = por %p58, %p59
      %p61 = scmp.ne.s32.totalorder %s49, %s50
      %p62 = scmp.eq.s32.totalorder %s19, 1
      %p63 = por %p61, %p62
      %p65 = scmp.ne.s32.totalorder %s50, %s64
      %p66 = scmp.eq.s32.totalorder %s19, 0
      %p67 = por %p65, %p66
      %s69 = sadd.s32 %s68, 1
      %p72 = scmp.eq.s32.totalorder %s13, 1
      %p73 = scmp.ne.s32.totalorder %s68, %s70
      %p74 = scmp.eq.s32.totalorder %s13, 0
      %p75 = por %p73, %p74
      %p76 = scmp.ne.s32.totalorder %s68, %s70
      %p77 = scmp.eq.s32.totalorder %s18, 1
      %p78 = por %p76, %p77
      %p79 = scmp.ne.s32.totalorder %s70, %s71
      %p80 = scmp.eq.s32.totalorder %s18, 0
      %p81 = por %p79, %p80
      %p82 = scmp.ne.s32.totalorder %s70, %s71
      %p83 = scmp.eq.s32.totalorder %s19, 1
      %p84 = por %p82, %p83
      %p86 = scmp.ne.s32.totalorder %s71, %s85
      %p87 = scmp.eq.s32.totalorder %s19, 0
      %p88 = por %p86, %p87
      %s89 = ssub.s32 %s13, %s20
      %p90 = scmp.eq.s32.totalorder %s89, 0
      %s92 = sadd.s32 %s91, 1
      %s93 = scalar_select %p90, %s91, %s92
      %p96 = pneg %p90
      %p97 = scmp.eq.s32.totalorder %s13, 1
      %p98 = por %p96, %p97
      %p99 = scmp.ne.s32.totalorder %s91, %s94
      %p100 = scmp.eq.s32.totalorder %s13, 0
      %p101 = por %p99, %p100
      %p102 = scmp.ne.s32.totalorder %s91, %s94
      %p103 = scmp.eq.s32.totalorder %s18, 1
      %p104 = por %p102, %p103
      %p105 = scmp.ne.s32.totalorder %s94, %s95
      %p106 = scmp.eq.s32.totalorder %s18, 0
      %p107 = por %p105, %p106
      %p108 = scmp.ne.s32.totalorder %s94, %s95
      %p109 = scmp.eq.s32.totalorder %s19, 1
      %p110 = por %p108, %p109
      %p112 = scmp.ne.s32.totalorder %s95, %s111
      %p113 = scmp.eq.s32.totalorder %s19, 0
      %p114 = por %p112, %p113
      %p115 = scmp.le.s32.totalorder 1, %s13
      %p116 = scmp.lt.s32.totalorder %s13, 3
      %p117 = pnand %p115, %p116
      %p118 = pneg %p117
      // Predicated region
      $region9: #{cond_mm_packed.1} parent=5 // pred_check
        _
      $region10: #{cond_mm_packed.1} parent=5 // pred_check_branch
        %120 = sbr.rel (%p117) target = $region12
      $region11: #{cond_mm_packed.1} parent=5 // pred_region
        %s121 = ssub.s32 %s13, 1
        // Predicated region
        $region13: #{cond_mm_packed.1} parent=11 // pred_check
          %p122 = pneg %p60
        $region14: #{cond_mm_packed.1} parent=11 // pred_check_branch
          %124 = sbr.rel (%p122) target = $region16
        $region15: #{cond_mm_packed.1} parent=11 // pred_region
          %s126 = ssub.s32 4096, 4096
          %127 = vsyncadd [#allocation3], %s126
          %s128 = sshll.u32 [#allocation2], 4
          %s129 = int_to_ptr.vmem [resolvable:$true] %s128
          %134 = dma.hbm_to_vmem [thread:$0]  %s1, 4096, %s129, [#allocation3], 256, 256, 16
        $region16: #{cond_mm_packed.1} parent=11 // pred_fallthru
          _
        // Predicated region
        $region17: #{cond_mm_packed.1} parent=11 // pred_check
          %p135 = pneg %p81
        $region18: #{cond_mm_packed.1} parent=11 // pred_check_branch
          %137 = sbr.rel (%p135) target = $region20
        $region19: #{cond_mm_packed.1} parent=11 // pred_region
          _
        $region20: #{cond_mm_packed.1} parent=11 // pred_fallthru
          _
      $region12: #{cond_mm_packed.1} parent=5 // pred_fallthru
        _
      %p138 = scmp.lt.s32.totalorder %s13, 2
      // Predicated region
      $region21: #{cond_mm_packed.1} parent=5 // pred_check
        %p139 = pneg %p138
      $region22: #{cond_mm_packed.1} parent=5 // pred_check_branch
        %141 = sbr.rel (%p139) target = $region24
      $region23: #{cond_mm_packed.1} parent=5 // pred_region
        // Predicated region
        $region25: #{cond_mm_packed.1} parent=23 // pred_check
          %p142 = pneg %p33
        $region26: #{cond_mm_packed.1} parent=23 // pred_check_branch
          %144 = sbr.rel (%p142) target = $region28
        $region27: #{cond_mm_packed.1} parent=23 // pred_region
          %p145 = scmp.lt.s32.totalorder %s13, 1
          %s146 = scalar_select %p145, %s13, 1
          %s147 = smul.addr %s146, 8
          %s148 = scalar_lea.vmem %s0, %s147
        $region28: #{cond_mm_packed.1} parent=23 // pred_fallthru
          _
      $region24: #{cond_mm_packed.1} parent=5 // pred_fallthru
        _
      %p149 = scmp.le.s32.totalorder 1, %s13
      %p150 = scmp.lt.s32.totalorder %s13, 3
      %p151 = pnand %p149, %p150
      %p152 = pneg %p151
      // Predicated region
      $region29: #{cond_mm_packed.1} parent=5 // pred_check
        _
      $region30: #{cond_mm_packed.1} parent=5 // pred_check_branch
        %154 = sbr.rel (%p151) target = $region32
      $region31: #{cond_mm_packed.1} parent=5 // pred_region
        %s155 = ssub.s32 %s13, 1
        // Predicated region
        $region33: #{cond_mm_packed.1} parent=31 // pred_check
          %p156 = pneg %p60
        $region34: #{cond_mm_packed.1} parent=31 // pred_check_branch
          %158 = sbr.rel (%p156) target = $region36
        $region35: #{cond_mm_packed.1} parent=31 // pred_region
          %159 = dma.done [#allocation3], 4096
        $region36: #{cond_mm_packed.1} parent=31 // pred_fallthru
          _
        %p160 = scmp.lt.s32.totalorder %s18, 1
        %s161 = scalar_select %p160, %s18, 1
        %s162 = smul.addr %s161, 8
        %s163 = scalar_lea.vmem %s0, %s162
        %p164 = pneg %p39
        %p165 = pneg %p36
        %p166 = pneg %p60
        %p167 = pneg %p57
        %p168 = pneg %p81
        %p169 = pneg %p78
        %p170 = pneg %p107
        %p171 = pneg %p104
        %s172 = sand.u32 %s94, 1
        %s173 = scalar_lea.sflag [#allocation4], %s172
        %s174 = sand.u32 %s94, 1
        %s175 = smul.addr %s174, 8
        %s176 = scalar_lea.vmem [#allocation5], %s175
        %p177 = scmp.lt.s32.totalorder %s18, 1
        %s178 = scalar_select %p177, %s18, 1
        %s179 = smul.addr %s178, 8
        %s180 = scalar_lea.vmem %s0, %s179
        %v182 = vld [vmem:[%s180] sm:$0xff]
        %v183 = vpack.c.bf16 %v182, %v182
        %v184 = vld [vmem:[#allocation2] sm:$0xff]
        %v185 = vld [vmem:[#allocation2 + $0x8] sm:$0xff]
        %v186 = vld [vmem:[#allocation2 + $0x10] sm:$0xff]
        %v187 = vld [vmem:[#allocation2 + $0x18] sm:$0xff]
        %v188 = vld [vmem:[#allocation2 + $0x20] sm:$0xff]
        %v189 = vld [vmem:[#allocation2 + $0x28] sm:$0xff]
        %v190 = vld [vmem:[#allocation2 + $0x30] sm:$0xff]
        %v191 = vld [vmem:[#allocation2 + $0x38] sm:$0xff]
        %v192 = vld [vmem:[#allocation2 + $0x40] sm:$0xff]
        %v193 = vld [vmem:[#allocation2 + $0x48] sm:$0xff]
        %v194 = vld [vmem:[#allocation2 + $0x50] sm:$0xff]
        %v195 = vld [vmem:[#allocation2 + $0x58] sm:$0xff]
        %v196 = vld [vmem:[#allocation2 + $0x60] sm:$0xff]
        %v197 = vld [vmem:[#allocation2 + $0x68] sm:$0xff]
        %v198 = vld [vmem:[#allocation2 + $0x70] sm:$0xff]
        %v199 = vld [vmem:[#allocation2 + $0x78] sm:$0xff]
        %v200 = vld [vmem:[#allocation2 + $0x80] sm:$0xff]
        %v201 = vld [vmem:[#allocation2 + $0x88] sm:$0xff]
        %v202 = vld [vmem:[#allocation2 + $0x90] sm:$0xff]
        %v203 = vld [vmem:[#allocation2 + $0x98] sm:$0xff]
        %v204 = vld [vmem:[#allocation2 + $0xa0] sm:$0xff]
        %v205 = vld [vmem:[#allocation2 + $0xa8] sm:$0xff]
        %v206 = vld [vmem:[#allocation2 + $0xb0] sm:$0xff]
        %v207 = vld [vmem:[#allocation2 + $0xb8] sm:$0xff]
        %v208 = vld [vmem:[#allocation2 + $0xc0] sm:$0xff]
        %v209 = vld [vmem:[#allocation2 + $0xc8] sm:$0xff]
        %v210 = vld [vmem:[#allocation2 + $0xd0] sm:$0xff]
        %v211 = vld [vmem:[#allocation2 + $0xd8] sm:$0xff]
        %v212 = vld [vmem:[#allocation2 + $0xe0] sm:$0xff]
        %v213 = vld [vmem:[#allocation2 + $0xe8] sm:$0xff]
        %v214 = vld [vmem:[#allocation2 + $0xf0] sm:$0xff]
        %v215 = vld [vmem:[#allocation2 + $0xf8] sm:$0xff]
        %v248 = vunpack.c.l.b16 %v184
        %v249 = vunpack.c.h.b16 %v184
        %v250 = vunpack.c.l.b16 %v185
        %v251 = vunpack.c.h.b16 %v185
        %v252 = vunpack.c.l.b16 %v186
        %v253 = vunpack.c.h.b16 %v186
        %v254 = vunpack.c.l.b16 %v187
        %v255 = vunpack.c.h.b16 %v187
        %v256 = vunpack.c.l.b16 %v188
        %v257 = vunpack.c.h.b16 %v188
        %v258 = vunpack.c.l.b16 %v189
        %v259 = vunpack.c.h.b16 %v189
        %v260 = vunpack.c.l.b16 %v190
        %v261 = vunpack.c.h.b16 %v190
        %v262 = vunpack.c.l.b16 %v191
        %v263 = vunpack.c.h.b16 %v191
        %v264 = vunpack.c.l.b16 %v192
        %v265 = vunpack.c.h.b16 %v192
        %v266 = vunpack.c.l.b16 %v193
        %v267 = vunpack.c.h.b16 %v193
        %v268 = vunpack.c.l.b16 %v194
        %v269 = vunpack.c.h.b16 %v194
        %v270 = vunpack.c.l.b16 %v195
        %v271 = vunpack.c.h.b16 %v195
        %v272 = vunpack.c.l.b16 %v196
        %v273 = vunpack.c.h.b16 %v196
        %v274 = vunpack.c.l.b16 %v197
        %v275 = vunpack.c.h.b16 %v197
        %v276 = vunpack.c.l.b16 %v198
        %v277 = vunpack.c.h.b16 %v198
        %v278 = vunpack.c.l.b16 %v199
        %v279 = vunpack.c.h.b16 %v199
        %v280 = vunpack.c.l.b16 %v200
        %v281 = vunpack.c.h.b16 %v200
        %v282 = vunpack.c.l.b16 %v201
        %v283 = vunpack.c.h.b16 %v201
        %v284 = vunpack.c.l.b16 %v202
        %v285 = vunpack.c.h.b16 %v202
        %v286 = vunpack.c.l.b16 %v203
        %v287 = vunpack.c.h.b16 %v203
        %v288 = vunpack.c.l.b16 %v204
        %v289 = vunpack.c.h.b16 %v204
        %v290 = vunpack.c.l.b16 %v205
        %v291 = vunpack.c.h.b16 %v205
        %v292 = vunpack.c.l.b16 %v206
        %v293 = vunpack.c.h.b16 %v206
        %v294 = vunpack.c.l.b16 %v207
        %v295 = vunpack.c.h.b16 %v207
        %v296 = vunpack.c.l.b16 %v208
        %v297 = vunpack.c.h.b16 %v208
        %v298 = vunpack.c.l.b16 %v209
        %v299 = vunpack.c.h.b16 %v209
        %v300 = vunpack.c.l.b16 %v210
        %v301 = vunpack.c.h.b16 %v210
        %v302 = vunpack.c.l.b16 %v211
        %v303 = vunpack.c.h.b16 %v211
        %v304 = vunpack.c.l.b16 %v212
        %v305 = vunpack.c.h.b16 %v212
        %v306 = vunpack.c.l.b16 %v213
        %v307 = vunpack.c.h.b16 %v213
        %v308 = vunpack.c.l.b16 %v214
        %v309 = vunpack.c.h.b16 %v214
        %v310 = vunpack.c.l.b16 %v215
        %v311 = vunpack.c.h.b16 %v215
        %v312 = vpack.c.b16 %v252, %v248
        %v313 = vpack.c.b16 %v253, %v249
        %v314 = vpack.c.b16 %v254, %v250
        %v315 = vpack.c.b16 %v255, %v251
        %v316 = vpack.c.b16 %v260, %v256
        %v317 = vpack.c.b16 %v261, %v257
        %v318 = vpack.c.b16 %v262, %v258
        %v319 = vpack.c.b16 %v263, %v259
        %v320 = vpack.c.b16 %v268, %v264
        %v321 = vpack.c.b16 %v269, %v265
        %v322 = vpack.c.b16 %v270, %v266
        %v323 = vpack.c.b16 %v271, %v267
        %v324 = vpack.c.b16 %v276, %v272
        %v325 = vpack.c.b16 %v277, %v273
        %v326 = vpack.c.b16 %v278, %v274
        %v327 = vpack.c.b16 %v279, %v275
        %v328 = vpack.c.b16 %v284, %v280
        %v329 = vpack.c.b16 %v285, %v281
        %v330 = vpack.c.b16 %v286, %v282
        %v331 = vpack.c.b16 %v287, %v283
        %v332 = vpack.c.b16 %v292, %v288
        %v333 = vpack.c.b16 %v293, %v289
        %v334 = vpack.c.b16 %v294, %v290
        %v335 = vpack.c.b16 %v295, %v291
        %v336 = vpack.c.b16 %v300, %v296
        %v337 = vpack.c.b16 %v301, %v297
        %v338 = vpack.c.b16 %v302, %v298
        %v339 = vpack.c.b16 %v303, %v299
        %v340 = vpack.c.b16 %v308, %v304
        %v341 = vpack.c.b16 %v309, %v305
        %v342 = vpack.c.b16 %v310, %v306
        %v343 = vpack.c.b16 %v311, %v307
        %376 = vmatprep.subr.bf16.mxu0 %v313
        %377 = vmatpush1.bf16.msra.mxu0 %v312
        %378 = vmatprep.subr.bf16.mxu0 %v317
        %379 = vmatpush1.bf16.msra.mxu0 %v316
        %380 = vmatprep.subr.bf16.mxu0 %v321
        %381 = vmatpush1.bf16.msra.mxu0 %v320
        %382 = vmatprep.subr.bf16.mxu0 %v325
        %383 = vmatpush1.bf16.msra.mxu0 %v324
        %384 = vmatprep.subr.bf16.mxu0 %v329
        %385 = vmatpush1.bf16.msra.mxu0 %v328
        %386 = vmatprep.subr.bf16.mxu0 %v333
        %387 = vmatpush1.bf16.msra.mxu0 %v332
        %388 = vmatprep.subr.bf16.mxu0 %v337
        %389 = vmatpush1.bf16.msra.mxu0 %v336
        %390 = vmatprep.subr.bf16.mxu0 %v341
        %391 = vmatpush1.bf16.msra.mxu0 %v340
        %392 = vmatprep.subr.bf16.mxu0 0
        %393 = vmatpush1.bf16.msra.mxu0 0
        %394 = vmatprep.subr.bf16.mxu0 0
        %395 = vmatpush1.bf16.msra.mxu0 0
        %396 = vmatprep.subr.bf16.mxu0 0
        %397 = vmatpush1.bf16.msra.mxu0 0
        %398 = vmatprep.subr.bf16.mxu0 0
        %399 = vmatpush1.bf16.msra.mxu0 0
        %400 = vmatprep.subr.bf16.mxu0 0
        %401 = vmatpush1.bf16.msra.mxu0 0
        %402 = vmatprep.subr.bf16.mxu0 0
        %403 = vmatpush1.bf16.msra.mxu0 0
        %404 = vmatprep.subr.bf16.mxu0 0
        %405 = vmatpush1.bf16.msra.mxu0 0
        %406 = vmatprep.subr.bf16.mxu0 0
        %407 = vmatpush1.bf16.msra.mxu0 0
        %408 = vmatprep.mubr.bf16.mxu0 0
        %409 = vmatmul.mubr.bf16.gmra.mrb[0].mxu0 %v183
        %v410 = vpop.f32.mrb[0].mxu0
        %v411 = vadd.f32 0.0, %v410
        %v412 = vpop.f32.mrb[0].mxu0
        %v413 = vadd.f32 0.0, %v412
        %v414 = vpop.f32.mrb[0].mxu0
        %v415 = vpop.f32.mrb[0].mxu0
        %416 = vdwg.mxu0
        %417 = vmatprep.subr.bf16.mxu0 %v315
        %418 = vmatpush1.bf16.msra.mxu0 %v314
        %419 = vmatprep.subr.bf16.mxu0 %v319
        %420 = vmatpush1.bf16.msra.mxu0 %v318
        %421 = vmatprep.subr.bf16.mxu0 %v323
        %422 = vmatpush1.bf16.msra.mxu0 %v322
        %423 = vmatprep.subr.bf16.mxu0 %v327
        %424 = vmatpush1.bf16.msra.mxu0 %v326
        %425 = vmatprep.subr.bf16.mxu0 %v331
        %426 = vmatpush1.bf16.msra.mxu0 %v330
        %427 = vmatprep.subr.bf16.mxu0 %v335
        %428 = vmatpush1.bf16.msra.mxu0 %v334
        %429 = vmatprep.subr.bf16.mxu0 %v339
        %430 = vmatpush1.bf16.msra.mxu0 %v338
        %431 = vmatprep.subr.bf16.mxu0 %v343
        %432 = vmatpush1.bf16.msra.mxu0 %v342
        %433 = vmatprep.subr.bf16.mxu0 0
        %434 = vmatpush1.bf16.msra.mxu0 0
        %435 = vmatprep.subr.bf16.mxu0 0
        %436 = vmatpush1.bf16.msra.mxu0 0
        %437 = vmatprep.subr.bf16.mxu0 0
        %438 = vmatpush1.bf16.msra.mxu0 0
        %439 = vmatprep.subr.bf16.mxu0 0
        %440 = vmatpush1.bf16.msra.mxu0 0
        %441 = vmatprep.subr.bf16.mxu0 0
        %442 = vmatpush1.bf16.msra.mxu0 0
        %443 = vmatprep.subr.bf16.mxu0 0
        %444 = vmatpush1.bf16.msra.mxu0 0
        %445 = vmatprep.subr.bf16.mxu0 0
        %446 = vmatpush1.bf16.msra.mxu0 0
        %447 = vmatprep.subr.bf16.mxu0 0
        %448 = vmatpush1.bf16.msra.mxu0 0
        %449 = vmatprep.mubr.bf16.mxu0 0
        %450 = vmatmul.mubr.bf16.gmra.mrb[0].mxu0 %v183
        %v451 = vpop.f32.mrb[0].mxu0
        %v452 = vadd.f32 0.0, %v451
        %v453 = vpop.f32.mrb[0].mxu0
        %v454 = vadd.f32 0.0, %v453
        %v455 = vpop.f32.mrb[0].mxu0
        %v456 = vpop.f32.mrb[0].mxu0
        %457 = vdwg.mxu0
        %v458 = vld [vmem:[%s2] sm:$0xff]
        %v459 = vld [vmem:[%s2 + $0x8] sm:$0xff]
        %v460 = vld [vmem:[%s2 + $0x10] sm:$0xff]
        %v461 = vld [vmem:[%s2 + $0x18] sm:$0xff]
        %v462 = vld [vmem:[%s2 + $0x20] sm:$0xff]
        %v463 = vld [vmem:[%s2 + $0x28] sm:$0xff]
        %v464 = vld [vmem:[%s2 + $0x30] sm:$0xff]
        %v465 = vld [vmem:[%s2 + $0x38] sm:$0xff]
        %v466 = vld [vmem:[%s2 + $0x40] sm:$0xff]
        %v467 = vld [vmem:[%s2 + $0x48] sm:$0xff]
        %v468 = vld [vmem:[%s2 + $0x50] sm:$0xff]
        %v469 = vld [vmem:[%s2 + $0x58] sm:$0xff]
        %v470 = vld [vmem:[%s2 + $0x60] sm:$0xff]
        %v471 = vld [vmem:[%s2 + $0x68] sm:$0xff]
        %v472 = vld [vmem:[%s2 + $0x70] sm:$0xff]
        %v473 = vld [vmem:[%s2 + $0x78] sm:$0xff]
        %474 = vmatprep.subr.mxu0 0.0
        %v475 = vand.u32 %v458, 4294901760
        %476 = vmatpush1.msra.mxu0 %v475
        %477 = vmatprep.subr.mxu0 0.0
        %v478 = vand.u32 %v459, 4294901760
        %479 = vmatpush1.msra.mxu0 %v478
        %480 = vmatprep.subr.mxu0 0.0
        %v481 = vand.u32 %v460, 4294901760
        %482 = vmatpush1.msra.mxu0 %v481
        %483 = vmatprep.subr.mxu0 0.0
        %v484 = vand.u32 %v461, 4294901760
        %485 = vmatpush1.msra.mxu0 %v484
        %486 = vmatprep.subr.mxu0 0.0
        %v487 = vand.u32 %v462, 4294901760
        %488 = vmatpush1.msra.mxu0 %v487
        %489 = vmatprep.subr.mxu0 0.0
        %v490 = vand.u32 %v463, 4294901760
        %491 = vmatpush1.msra.mxu0 %v490
        %492 = vmatprep.subr.mxu0 0.0
        %v493 = vand.u32 %v464, 4294901760
        %494 = vmatpush1.msra.mxu0 %v493
        %495 = vmatprep.subr.mxu0 0.0
        %v496 = vand.u32 %v465, 4294901760
        %497 = vmatpush1.msra.mxu0 %v496
        %498 = vmatprep.subr.mxu0 0.0
        %v499 = vand.u32 %v466, 4294901760
        %500 = vmatpush1.msra.mxu0 %v499
        %501 = vmatprep.subr.mxu0 0.0
        %v502 = vand.u32 %v467, 4294901760
        %503 = vmatpush1.msra.mxu0 %v502
        %504 = vmatprep.subr.mxu0 0.0
        %v505 = vand.u32 %v468, 4294901760
        %506 = vmatpush1.msra.mxu0 %v505
        %507 = vmatprep.subr.mxu0 0.0
        %v508 = vand.u32 %v469, 4294901760
        %509 = vmatpush1.msra.mxu0 %v508
        %510 = vmatprep.subr.mxu0 0.0
        %v511 = vand.u32 %v470, 4294901760
        %512 = vmatpush1.msra.mxu0 %v511
        %513 = vmatprep.subr.mxu0 0.0
        %v514 = vand.u32 %v471, 4294901760
        %515 = vmatpush1.msra.mxu0 %v514
        %516 = vmatprep.subr.mxu0 0.0
        %v517 = vand.u32 %v472, 4294901760
        %518 = vmatpush1.msra.mxu0 %v517
        %519 = vmatprep.subr.mxu0 0.0
        %v520 = vand.u32 %v473, 4294901760
        %521 = vmatpush1.msra.mxu0 %v520
        %522 = vmatprep.subr.mxu0 0.0
        %523 = vmatpush1.msra.mxu0 0.0
        %524 = vmatprep.subr.mxu0 0.0
        %525 = vmatpush1.msra.mxu0 0.0
        %526 = vmatprep.subr.mxu0 0.0
        %527 = vmatpush1.msra.mxu0 0.0
        %528 = vmatprep.subr.mxu0 0.0
        %529 = vmatpush1.msra.mxu0 0.0
        %530 = vmatprep.subr.mxu0 0.0
        %531 = vmatpush1.msra.mxu0 0.0
        %532 = vmatprep.subr.mxu0 0.0
        %533 = vmatpush1.msra.mxu0 0.0
        %534 = vmatprep.subr.mxu0 0.0
        %535 = vmatpush1.msra.mxu0 0.0
        %536 = vmatprep.subr.mxu0 0.0
        %537 = vmatpush1.msra.mxu0 0.0
        %538 = vmatprep.subr.mxu0 0.0
        %539 = vmatpush1.msra.mxu0 0.0
        %540 = vmatprep.subr.mxu0 0.0
        %541 = vmatpush1.msra.mxu0 0.0
        %542 = vmatprep.subr.mxu0 0.0
        %543 = vmatpush1.msra.mxu0 0.0
        %544 = vmatprep.subr.mxu0 0.0
        %545 = vmatpush1.msra.mxu0 0.0
        %546 = vmatprep.subr.mxu0 0.0
        %547 = vmatpush1.msra.mxu0 0.0
        %548 = vmatprep.subr.mxu0 0.0
        %549 = vmatpush1.msra.mxu0 0.0
        %550 = vmatprep.subr.mxu0 0.0
        %551 = vmatpush1.msra.mxu0 0.0
        %552 = vmatprep.subr.mxu0 0.0
        %553 = vmatpush1.msra.mxu0 0.0
        %554 = vmatprep.mubr.f32.mxu0 0.0
        %v555 = vand.u32 %v182, 4294901760
        %v556 = vsub.f32 %v182, %v555
        %v557 = vand.u32 %v556, 4294901760
        %v558 = vsub.f32 %v556, %v557
        %v559 = vand.u32 %v558, 4294901760
        %560 = vmatmul.mubr.f32.gmra.mrb[0].mxu0 %v559
        %v561 = vpop.f32.mrb[0].mxu0
        %v562 = vadd.f32 0.0, %v561
        %v563 = vpop.f32.mrb[0].mxu0
        %564 = vdwg.mxu0
        %565 = vmatprep.subr.mxu0 0.0
        %v566 = vand.u32 %v458, 4294901760
        %v567 = vsub.f32 %v458, %v566
        %v568 = vand.u32 %v567, 4294901760
        %v569 = vsub.f32 %v567, %v568
        %v570 = vand.u32 %v569, 4294901760
        %571 = vmatpush1.msra.mxu0 %v570
        %572 = vmatprep.subr.mxu0 0.0
        %v573 = vand.u32 %v459, 4294901760
        %v574 = vsub.f32 %v459, %v573
        %v575 = vand.u32 %v574, 4294901760
        %v576 = vsub.f32 %v574, %v575
        %v577 = vand.u32 %v576, 4294901760
        %578 = vmatpush1.msra.mxu0 %v577
        %579 = vmatprep.subr.mxu0 0.0
        %v580 = vand.u32 %v460, 4294901760
        %v581 = vsub.f32 %v460, %v580
        %v582 = vand.u32 %v581, 4294901760
        %v583 = vsub.f32 %v581, %v582
        %v584 = vand.u32 %v583, 4294901760
        %585 = vmatpush1.msra.mxu0 %v584
        %586 = vmatprep.subr.mxu0 0.0
        %v587 = vand.u32 %v461, 4294901760
        %v588 = vsub.f32 %v461, %v587
        %v589 = vand.u32 %v588, 4294901760
        %v590 = vsub.f32 %v588, %v589
        %v591 = vand.u32 %v590, 4294901760
        %592 = vmatpush1.msra.mxu0 %v591
        %593 = vmatprep.subr.mxu0 0.0
        %v594 = vand.u32 %v462, 4294901760
        %v595 = vsub.f32 %v462, %v594
        %v596 = vand.u32 %v595, 4294901760
        %v597 = vsub.f32 %v595, %v596
        %v598 = vand.u32 %v597, 4294901760
        %599 = vmatpush1.msra.mxu0 %v598
        %600 = vmatprep.subr.mxu0 0.0
        %v601 = vand.u32 %v463, 4294901760
        %v602 = vsub.f32 %v463, %v601
        %v603 = vand.u32 %v602, 4294901760
        %v604 = vsub.f32 %v602, %v603
        %v605 = vand.u32 %v604, 4294901760
        %606 = vmatpush1.msra.mxu0 %v605
        %607 = vmatprep.subr.mxu0 0.0
        %v608 = vand.u32 %v464, 4294901760
        %v609 = vsub.f32 %v464, %v608
        %v610 = vand.u32 %v609, 4294901760
        %v611 = vsub.f32 %v609, %v610
        %v612 = vand.u32 %v611, 4294901760
        %613 = vmatpush1.msra.mxu0 %v612
        %614 = vmatprep.subr.mxu0 0.0
        %v615 = vand.u32 %v465, 4294901760
        %v616 = vsub.f32 %v465, %v615
        %v617 = vand.u32 %v616, 4294901760
        %v618 = vsub.f32 %v616, %v617
        %v619 = vand.u32 %v618, 4294901760
        %620 = vmatpush1.msra.mxu0 %v619
        %621 = vmatprep.subr.mxu0 0.0
        %v622 = vand.u32 %v466, 4294901760
        %v623 = vsub.f32 %v466, %v622
        %v624 = vand.u32 %v623, 4294901760
        %v625 = vsub.f32 %v623, %v624
        %v626 = vand.u32 %v625, 4294901760
        %627 = vmatpush1.msra.mxu0 %v626
        %628 = vmatprep.subr.mxu0 0.0
        %v629 = vand.u32 %v467, 4294901760
        %v630 = vsub.f32 %v467, %v629
        %v631 = vand.u32 %v630, 4294901760
        %v632 = vsub.f32 %v630, %v631
        %v633 = vand.u32 %v632, 4294901760
        %634 = vmatpush1.msra.mxu0 %v633
        %635 = vmatprep.subr.mxu0 0.0
        %v636 = vand.u32 %v468, 4294901760
        %v637 = vsub.f32 %v468, %v636
        %v638 = vand.u32 %v637, 4294901760
        %v639 = vsub.f32 %v637, %v638
        %v640 = vand.u32 %v639, 4294901760
        %641 = vmatpush1.msra.mxu0 %v640
        %642 = vmatprep.subr.mxu0 0.0
        %v643 = vand.u32 %v469, 4294901760
        %v644 = vsub.f32 %v469, %v643
        %v645 = vand.u32 %v644, 4294901760
        %v646 = vsub.f32 %v644, %v645
        %v647 = vand.u32 %v646, 4294901760
        %648 = vmatpush1.msra.mxu0 %v647
        %649 = vmatprep.subr.mxu0 0.0
        %v650 = vand.u32 %v470, 4294901760
        %v651 = vsub.f32 %v470, %v650
        %v652 = vand.u32 %v651, 4294901760
        %v653 = vsub.f32 %v651, %v652
        %v654 = vand.u32 %v653, 4294901760
        %655 = vmatpush1.msra.mxu0 %v654
        %656 = vmatprep.subr.mxu0 0.0
        %v657 = vand.u32 %v471, 4294901760
        %v658 = vsub.f32 %v471, %v657
        %v659 = vand.u32 %v658, 4294901760
        %v660 = vsub.f32 %v658, %v659
        %v661 = vand.u32 %v660, 4294901760
        %662 = vmatpush1.msra.mxu0 %v661
        %663 = vmatprep.subr.mxu0 0.0
        %v664 = vand.u32 %v472, 4294901760
        %v665 = vsub.f32 %v472, %v664
        %v666 = vand.u32 %v665, 4294901760
        %v667 = vsub.f32 %v665, %v666
        %v668 = vand.u32 %v667, 4294901760
        %669 = vmatpush1.msra.mxu0 %v668
        %670 = vmatprep.subr.mxu0 0.0
        %v671 = vand.u32 %v473, 4294901760
        %v672 = vsub.f32 %v473, %v671
        %v673 = vand.u32 %v672, 4294901760
        %v674 = vsub.f32 %v672, %v673
        %v675 = vand.u32 %v674, 4294901760
        %676 = vmatpush1.msra.mxu0 %v675
        %677 = vmatprep.subr.mxu0 0.0
        %678 = vmatpush1.msra.mxu0 0.0
        %679 = vmatprep.subr.mxu0 0.0
        %680 = vmatpush1.msra.mxu0 0.0
        %681 = vmatprep.subr.mxu0 0.0
        %682 = vmatpush1.msra.mxu0 0.0
        %683 = vmatprep.subr.mxu0 0.0
        %684 = vmatpush1.msra.mxu0 0.0
        %685 = vmatprep.subr.mxu0 0.0
        %686 = vmatpush1.msra.mxu0 0.0
        %687 = vmatprep.subr.mxu0 0.0
        %688 = vmatpush1.msra.mxu0 0.0
        %689 = vmatprep.subr.mxu0 0.0
        %690 = vmatpush1.msra.mxu0 0.0
        %691 = vmatprep.subr.mxu0 0.0
        %692 = vmatpush1.msra.mxu0 0.0
        %693 = vmatprep.subr.mxu0 0.0
        %694 = vmatpush1.msra.mxu0 0.0
        %695 = vmatprep.subr.mxu0 0.0
        %696 = vmatpush1.msra.mxu0 0.0
        %697 = vmatprep.subr.mxu0 0.0
        %698 = vmatpush1.msra.mxu0 0.0
        %699 = vmatprep.subr.mxu0 0.0
        %700 = vmatpush1.msra.mxu0 0.0
        %701 = vmatprep.subr.mxu0 0.0
        %702 = vmatpush1.msra.mxu0 0.0
        %703 = vmatprep.subr.mxu0 0.0
        %704 = vmatpush1.msra.mxu0 0.0
        %705 = vmatprep.subr.mxu0 0.0
        %706 = vmatpush1.msra.mxu0 0.0
        %707 = vmatprep.subr.mxu0 0.0
        %708 = vmatpush1.msra.mxu0 0.0
        %709 = vmatprep.mubr.f32.mxu0 0.0
        %v710 = vand.u32 %v182, 4294901760
        %711 = vmatmul.mubr.f32.gmra.mrb[0].mxu0 %v710
        %v712 = vpop.f32.mrb[0].mxu0
        %v713 = vadd.f32 %v562, %v712
        %v714 = vpop.f32.mrb[0].mxu0
        %715 = vdwg.mxu0
        %716 = vmatprep.subr.mxu0 0.0
        %v717 = vand.u32 %v458, 4294901760
        %v718 = vsub.f32 %v458, %v717
        %719 = vmatpush1.msra.mxu0 %v718
        %720 = vmatprep.subr.mxu0 0.0
        %v721 = vand.u32 %v459, 4294901760
        %v722 = vsub.f32 %v459, %v721
        %723 = vmatpush1.msra.mxu0 %v722
        %724 = vmatprep.subr.mxu0 0.0
        %v725 = vand.u32 %v460, 4294901760
        %v726 = vsub.f32 %v460, %v725
        %727 = vmatpush1.msra.mxu0 %v726
        %728 = vmatprep.subr.mxu0 0.0
        %v729 = vand.u32 %v461, 4294901760
        %v730 = vsub.f32 %v461, %v729
        %731 = vmatpush1.msra.mxu0 %v730
        %732 = vmatprep.subr.mxu0 0.0
        %v733 = vand.u32 %v462, 4294901760
        %v734 = vsub.f32 %v462, %v733
        %735 = vmatpush1.msra.mxu0 %v734
        %736 = vmatprep.subr.mxu0 0.0
        %v737 = vand.u32 %v463, 4294901760
        %v738 = vsub.f32 %v463, %v737
        %739 = vmatpush1.msra.mxu0 %v738
        %740 = vmatprep.subr.mxu0 0.0
        %v741 = vand.u32 %v464, 4294901760
        %v742 = vsub.f32 %v464, %v741
        %743 = vmatpush1.msra.mxu0 %v742
        %744 = vmatprep.subr.mxu0 0.0
        %v745 = vand.u32 %v465, 4294901760
        %v746 = vsub.f32 %v465, %v745
        %747 = vmatpush1.msra.mxu0 %v746
        %748 = vmatprep.subr.mxu0 0.0
        %v749 = vand.u32 %v466, 4294901760
        %v750 = vsub.f32 %v466, %v749
        %751 = vmatpush1.msra.mxu0 %v750
        %752 = vmatprep.subr.mxu0 0.0
        %v753 = vand.u32 %v467, 4294901760
        %v754 = vsub.f32 %v467, %v753
        %755 = vmatpush1.msra.mxu0 %v754
        %756 = vmatprep.subr.mxu0 0.0
        %v757 = vand.u32 %v468, 4294901760
        %v758 = vsub.f32 %v468, %v757
        %759 = vmatpush1.msra.mxu0 %v758
        %760 = vmatprep.subr.mxu0 0.0
        %v761 = vand.u32 %v469, 4294901760
        %v762 = vsub.f32 %v469, %v761
        %763 = vmatpush1.msra.mxu0 %v762
        %764 = vmatprep.subr.mxu0 0.0
        %v765 = vand.u32 %v470, 4294901760
        %v766 = vsub.f32 %v470, %v765
        %767 = vmatpush1.msra.mxu0 %v766
        %768 = vmatprep.subr.mxu0 0.0
        %v769 = vand.u32 %v471, 4294901760
        %v770 = vsub.f32 %v471, %v769
        %771 = vmatpush1.msra.mxu0 %v770
        %772 = vmatprep.subr.mxu0 0.0
        %v773 = vand.u32 %v472, 4294901760
        %v774 = vsub.f32 %v472, %v773
        %775 = vmatpush1.msra.mxu0 %v774
        %776 = vmatprep.subr.mxu0 0.0
        %v777 = vand.u32 %v473, 4294901760
        %v778 = vsub.f32 %v473, %v777
        %779 = vmatpush1.msra.mxu0 %v778
        %780 = vmatprep.subr.mxu0 0.0
        %781 = vmatpush1.msra.mxu0 0.0
        %782 = vmatprep.subr.mxu0 0.0
        %783 = vmatpush1.msra.mxu0 0.0
        %784 = vmatprep.subr.mxu0 0.0
        %785 = vmatpush1.msra.mxu0 0.0
        %786 = vmatprep.subr.mxu0 0.0
        %787 = vmatpush1.msra.mxu0 0.0
        %788 = vmatprep.subr.mxu0 0.0
        %789 = vmatpush1.msra.mxu0 0.0
        %790 = vmatprep.subr.mxu0 0.0
        %791 = vmatpush1.msra.mxu0 0.0
        %792 = vmatprep.subr.mxu0 0.0
        %793 = vmatpush1.msra.mxu0 0.0
        %794 = vmatprep.subr.mxu0 0.0
        %795 = vmatpush1.msra.mxu0 0.0
        %796 = vmatprep.subr.mxu0 0.0
        %797 = vmatpush1.msra.mxu0 0.0
        %798 = vmatprep.subr.mxu0 0.0
        %799 = vmatpush1.msra.mxu0 0.0
        %800 = vmatprep.subr.mxu0 0.0
        %801 = vmatpush1.msra.mxu0 0.0
        %802 = vmatprep.subr.mxu0 0.0
        %803 = vmatpush1.msra.mxu0 0.0
        %804 = vmatprep.subr.mxu0 0.0
        %805 = vmatpush1.msra.mxu0 0.0
        %806 = vmatprep.subr.mxu0 0.0
        %807 = vmatpush1.msra.mxu0 0.0
        %808 = vmatprep.subr.mxu0 0.0
        %809 = vmatpush1.msra.mxu0 0.0
        %810 = vmatprep.subr.mxu0 0.0
        %811 = vmatpush1.msra.mxu0 0.0
        %812 = vmatprep.mubr.f32.mxu0 0.0
        %v813 = vand.u32 %v182, 4294901760
        %v814 = vsub.f32 %v182, %v813
        %815 = vmatmul.mubr.f32.gmra.mrb[0].mxu0 %v814
        %v816 = vpop.f32.mrb[0].mxu0
        %v817 = vadd.f32 %v713, %v816
        %v818 = vpop.f32.mrb[0].mxu0
        %819 = vdwg.mxu0
        %820 = vmatprep.subr.mxu0 0.0
        %v821 = vand.u32 %v458, 4294901760
        %822 = vmatpush1.msra.mxu0 %v821
        %823 = vmatprep.subr.mxu0 0.0
        %v824 = vand.u32 %v459, 4294901760
        %825 = vmatpush1.msra.mxu0 %v824
        %826 = vmatprep.subr.mxu0 0.0
        %v827 = vand.u32 %v460, 4294901760
        %828 = vmatpush1.msra.mxu0 %v827
        %829 = vmatprep.subr.mxu0 0.0
        %v830 = vand.u32 %v461, 4294901760
        %831 = vmatpush1.msra.mxu0 %v830
        %832 = vmatprep.subr.mxu0 0.0
        %v833 = vand.u32 %v462, 4294901760
        %834 = vmatpush1.msra.mxu0 %v833
        %835 = vmatprep.subr.mxu0 0.0
        %v836 = vand.u32 %v463, 4294901760
        %837 = vmatpush1.msra.mxu0 %v836
        %838 = vmatprep.subr.mxu0 0.0
        %v839 = vand.u32 %v464, 4294901760
        %840 = vmatpush1.msra.mxu0 %v839
        %841 = vmatprep.subr.mxu0 0.0
        %v842 = vand.u32 %v465, 4294901760
        %843 = vmatpush1.msra.mxu0 %v842
        %844 = vmatprep.subr.mxu0 0.0
        %v845 = vand.u32 %v466, 4294901760
        %846 = vmatpush1.msra.mxu0 %v845
        %847 = vmatprep.subr.mxu0 0.0
        %v848 = vand.u32 %v467, 4294901760
        %849 = vmatpush1.msra.mxu0 %v848
        %850 = vmatprep.subr.mxu0 0.0
        %v851 = vand.u32 %v468, 4294901760
        %852 = vmatpush1.msra.mxu0 %v851
        %853 = vmatprep.subr.mxu0 0.0
        %v854 = vand.u32 %v469, 4294901760
        %855 = vmatpush1.msra.mxu0 %v854
        %856 = vmatprep.subr.mxu0 0.0
        %v857 = vand.u32 %v470, 4294901760
        %858 = vmatpush1.msra.mxu0 %v857
        %859 = vmatprep.subr.mxu0 0.0
        %v860 = vand.u32 %v471, 4294901760
        %861 = vmatpush1.msra.mxu0 %v860
        %862 = vmatprep.subr.mxu0 0.0
        %v863 = vand.u32 %v472, 4294901760
        %864 = vmatpush1.msra.mxu0 %v863
        %865 = vmatprep.subr.mxu0 0.0
        %v866 = vand.u32 %v473, 4294901760
        %867 = vmatpush1.msra.mxu0 %v866
        %868 = vmatprep.subr.mxu0 0.0
        %869 = vmatpush1.msra.mxu0 0.0
        %870 = vmatprep.subr.mxu0 0.0
        %871 = vmatpush1.msra.mxu0 0.0
        %872 = vmatprep.subr.mxu0 0.0
        %873 = vmatpush1.msra.mxu0 0.0
        %874 = vmatprep.subr.mxu0 0.0
        %875 = vmatpush1.msra.mxu0 0.0
        %876 = vmatprep.subr.mxu0 0.0
        %877 = vmatpush1.msra.mxu0 0.0
        %878 = vmatprep.subr.mxu0 0.0
        %879 = vmatpush1.msra.mxu0 0.0
        %880 = vmatprep.subr.mxu0 0.0
        %881 = vmatpush1.msra.mxu0 0.0
        %882 = vmatprep.subr.mxu0 0.0
        %883 = vmatpush1.msra.mxu0 0.0
        %884 = vmatprep.subr.mxu0 0.0
        %885 = vmatpush1.msra.mxu0 0.0
        %886 = vmatprep.subr.mxu0 0.0
        %887 = vmatpush1.msra.mxu0 0.0
        %888 = vmatprep.subr.mxu0 0.0
        %889 = vmatpush1.msra.mxu0 0.0
        %890 = vmatprep.subr.mxu0 0.0
        %891 = vmatpush1.msra.mxu0 0.0
        %892 = vmatprep.subr.mxu0 0.0
        %893 = vmatpush1.msra.mxu0 0.0
        %894 = vmatprep.subr.mxu0 0.0
        %895 = vmatpush1.msra.mxu0 0.0
        %896 = vmatprep.subr.mxu0 0.0
        %897 = vmatpush1.msra.mxu0 0.0
        %898 = vmatprep.subr.mxu0 0.0
        %899 = vmatpush1.msra.mxu0 0.0
        %900 = vmatprep.mubr.f32.mxu0 0.0
        %v901 = vand.u32 %v182, 4294901760
        %v902 = vsub.f32 %v182, %v901
        %v903 = vand.u32 %v902, 4294901760
        %904 = vmatmul.mubr.f32.gmra.mrb[0].mxu0 %v903
        %v905 = vpop.f32.mrb[0].mxu0
        %v906 = vadd.f32 %v817, %v905
        %v907 = vpop.f32.mrb[0].mxu0
        %908 = vdwg.mxu0
        %909 = vmatprep.subr.mxu0 0.0
        %v910 = vand.u32 %v458, 4294901760
        %v911 = vsub.f32 %v458, %v910
        %v912 = vand.u32 %v911, 4294901760
        %913 = vmatpush1.msra.mxu0 %v912
        %914 = vmatprep.subr.mxu0 0.0
        %v915 = vand.u32 %v459, 4294901760
        %v916 = vsub.f32 %v459, %v915
        %v917 = vand.u32 %v916, 4294901760
        %918 = vmatpush1.msra.mxu0 %v917
        %919 = vmatprep.subr.mxu0 0.0
        %v920 = vand.u32 %v460, 4294901760
        %v921 = vsub.f32 %v460, %v920
        %v922 = vand.u32 %v921, 4294901760
        %923 = vmatpush1.msra.mxu0 %v922
        %924 = vmatprep.subr.mxu0 0.0
        %v925 = vand.u32 %v461, 4294901760
        %v926 = vsub.f32 %v461, %v925
        %v927 = vand.u32 %v926, 4294901760
        %928 = vmatpush1.msra.mxu0 %v927
        %929 = vmatprep.subr.mxu0 0.0
        %v930 = vand.u32 %v462, 4294901760
        %v931 = vsub.f32 %v462, %v930
        %v932 = vand.u32 %v931, 4294901760
        %933 = vmatpush1.msra.mxu0 %v932
        %934 = vmatprep.subr.mxu0 0.0
        %v935 = vand.u32 %v463, 4294901760
        %v936 = vsub.f32 %v463, %v935
        %v937 = vand.u32 %v936, 4294901760
        %938 = vmatpush1.msra.mxu0 %v937
        %939 = vmatprep.subr.mxu0 0.0
        %v940 = vand.u32 %v464, 4294901760
        %v941 = vsub.f32 %v464, %v940
        %v942 = vand.u32 %v941, 4294901760
        %943 = vmatpush1.msra.mxu0 %v942
        %944 = vmatprep.subr.mxu0 0.0
        %v945 = vand.u32 %v465, 4294901760
        %v946 = vsub.f32 %v465, %v945
        %v947 = vand.u32 %v946, 4294901760
        %948 = vmatpush1.msra.mxu0 %v947
        %949 = vmatprep.subr.mxu0 0.0
        %v950 = vand.u32 %v466, 4294901760
        %v951 = vsub.f32 %v466, %v950
        %v952 = vand.u32 %v951, 4294901760
        %953 = vmatpush1.msra.mxu0 %v952
        %954 = vmatprep.subr.mxu0 0.0
        %v955 = vand.u32 %v467, 4294901760
        %v956 = vsub.f32 %v467, %v955
        %v957 = vand.u32 %v956, 4294901760
        %958 = vmatpush1.msra.mxu0 %v957
        %959 = vmatprep.subr.mxu0 0.0
        %v960 = vand.u32 %v468, 4294901760
        %v961 = vsub.f32 %v468, %v960
        %v962 = vand.u32 %v961, 4294901760
        %963 = vmatpush1.msra.mxu0 %v962
        %964 = vmatprep.subr.mxu0 0.0
        %v965 = vand.u32 %v469, 4294901760
        %v966 = vsub.f32 %v469, %v965
        %v967 = vand.u32 %v966, 4294901760
        %968 = vmatpush1.msra.mxu0 %v967
        %969 = vmatprep.subr.mxu0 0.0
        %v970 = vand.u32 %v470, 4294901760
        %v971 = vsub.f32 %v470, %v970
        %v972 = vand.u32 %v971, 4294901760
        %973 = vmatpush1.msra.mxu0 %v972
        %974 = vmatprep.subr.mxu0 0.0
        %v975 = vand.u32 %v471, 4294901760
        %v976 = vsub.f32 %v471, %v975
        %v977 = vand.u32 %v976, 4294901760
        %978 = vmatpush1.msra.mxu0 %v977
        %979 = vmatprep.subr.mxu0 0.0
        %v980 = vand.u32 %v472, 4294901760
        %v981 = vsub.f32 %v472, %v980
        %v982 = vand.u32 %v981, 4294901760
        %983 = vmatpush1.msra.mxu0 %v982
        %984 = vmatprep.subr.mxu0 0.0
        %v985 = vand.u32 %v473, 4294901760
        %v986 = vsub.f32 %v473, %v985
        %v987 = vand.u32 %v986, 4294901760
        %988 = vmatpush1.msra.mxu0 %v987
        %989 = vmatprep.subr.mxu0 0.0
        %990 = vmatpush1.msra.mxu0 0.0
        %991 = vmatprep.subr.mxu0 0.0
        %992 = vmatpush1.msra.mxu0 0.0
        %993 = vmatprep.subr.mxu0 0.0
        %994 = vmatpush1.msra.mxu0 0.0
        %995 = vmatprep.subr.mxu0 0.0
        %996 = vmatpush1.msra.mxu0 0.0
        %997 = vmatprep.subr.mxu0 0.0
        %998 = vmatpush1.msra.mxu0 0.0
        %999 = vmatprep.subr.mxu0 0.0
        %1000 = vmatpush1.msra.mxu0 0.0
        %1001 = vmatprep.subr.mxu0 0.0
        %1002 = vmatpush1.msra.mxu0 0.0
        %1003 = vmatprep.subr.mxu0 0.0
        %1004 = vmatpush1.msra.mxu0 0.0
        %1005 = vmatprep.subr.mxu0 0.0
        %1006 = vmatpush1.msra.mxu0 0.0
        %1007 = vmatprep.subr.mxu0 0.0
        %1008 = vmatpush1.msra.mxu0 0.0
        %1009 = vmatprep.subr.mxu0 0.0
        %1010 = vmatpush1.msra.mxu0 0.0
        %1011 = vmatprep.subr.mxu0 0.0
        %1012 = vmatpush1.msra.mxu0 0.0
        %1013 = vmatprep.subr.mxu0 0.0
        %1014 = vmatpush1.msra.mxu0 0.0
        %1015 = vmatprep.subr.mxu0 0.0
        %1016 = vmatpush1.msra.mxu0 0.0
        %1017 = vmatprep.subr.mxu0 0.0
        %1018 = vmatpush1.msra.mxu0 0.0
        %1019 = vmatprep.subr.mxu0 0.0
        %1020 = vmatpush1.msra.mxu0 0.0
        %1021 = vmatprep.mubr.f32.mxu0 0.0
        %v1022 = vand.u32 %v182, 4294901760
        %1023 = vmatmul.mubr.f32.gmra.mrb[0].mxu0 %v1022
        %v1024 = vpop.f32.mrb[0].mxu0
        %v1025 = vadd.f32 %v906, %v1024
        %v1026 = vpop.f32.mrb[0].mxu0
        %1027 = vdwg.mxu0
        %1028 = vmatprep.subr.mxu0 0.0
        %v1029 = vand.u32 %v458, 4294901760
        %1030 = vmatpush1.msra.mxu0 %v1029
        %1031 = vmatprep.subr.mxu0 0.0
        %v1032 = vand.u32 %v459, 4294901760
        %1033 = vmatpush1.msra.mxu0 %v1032
        %1034 = vmatprep.subr.mxu0 0.0
        %v1035 = vand.u32 %v460, 4294901760
        %1036 = vmatpush1.msra.mxu0 %v1035
        %1037 = vmatprep.subr.mxu0 0.0
        %v1038 = vand.u32 %v461, 4294901760
        %1039 = vmatpush1.msra.mxu0 %v1038
        %1040 = vmatprep.subr.mxu0 0.0
        %v1041 = vand.u32 %v462, 4294901760
        %1042 = vmatpush1.msra.mxu0 %v1041
        %1043 = vmatprep.subr.mxu0 0.0
        %v1044 = vand.u32 %v463, 4294901760
        %1045 = vmatpush1.msra.mxu0 %v1044
        %1046 = vmatprep.subr.mxu0 0.0
        %v1047 = vand.u32 %v464, 4294901760
        %1048 = vmatpush1.msra.mxu0 %v1047
        %1049 = vmatprep.subr.mxu0 0.0
        %v1050 = vand.u32 %v465, 4294901760
        %1051 = vmatpush1.msra.mxu0 %v1050
        %1052 = vmatprep.subr.mxu0 0.0
        %v1053 = vand.u32 %v466, 4294901760
        %1054 = vmatpush1.msra.mxu0 %v1053
        %1055 = vmatprep.subr.mxu0 0.0
        %v1056 = vand.u32 %v467, 4294901760
        %1057 = vmatpush1.msra.mxu0 %v1056
        %1058 = vmatprep.subr.mxu0 0.0
        %v1059 = vand.u32 %v468, 4294901760
        %1060 = vmatpush1.msra.mxu0 %v1059
        %1061 = vmatprep.subr.mxu0 0.0
        %v1062 = vand.u32 %v469, 4294901760
        %1063 = vmatpush1.msra.mxu0 %v1062
        %1064 = vmatprep.subr.mxu0 0.0
        %v1065 = vand.u32 %v470, 4294901760
        %1066 = vmatpush1.msra.mxu0 %v1065
        %1067 = vmatprep.subr.mxu0 0.0
        %v1068 = vand.u32 %v471, 4294901760
        %1069 = vmatpush1.msra.mxu0 %v1068
        %1070 = vmatprep.subr.mxu0 0.0
        %v1071 = vand.u32 %v472, 4294901760
        %1072 = vmatpush1.msra.mxu0 %v1071
        %1073 = vmatprep.subr.mxu0 0.0
        %v1074 = vand.u32 %v473, 4294901760
        %1075 = vmatpush1.msra.mxu0 %v1074
        %1076 = vmatprep.subr.mxu0 0.0
        %1077 = vmatpush1.msra.mxu0 0.0
        %1078 = vmatprep.subr.mxu0 0.0
        %1079 = vmatpush1.msra.mxu0 0.0
        %1080 = vmatprep.subr.mxu0 0.0
        %1081 = vmatpush1.msra.mxu0 0.0
        %1082 = vmatprep.subr.mxu0 0.0
        %1083 = vmatpush1.msra.mxu0 0.0
        %1084 = vmatprep.subr.mxu0 0.0
        %1085 = vmatpush1.msra.mxu0 0.0
        %1086 = vmatprep.subr.mxu0 0.0
        %1087 = vmatpush1.msra.mxu0 0.0
        %1088 = vmatprep.subr.mxu0 0.0
        %1089 = vmatpush1.msra.mxu0 0.0
        %1090 = vmatprep.subr.mxu0 0.0
        %1091 = vmatpush1.msra.mxu0 0.0
        %1092 = vmatprep.subr.mxu0 0.0
        %1093 = vmatpush1.msra.mxu0 0.0
        %1094 = vmatprep.subr.mxu0 0.0
        %1095 = vmatpush1.msra.mxu0 0.0
        %1096 = vmatprep.subr.mxu0 0.0
        %1097 = vmatpush1.msra.mxu0 0.0
        %1098 = vmatprep.subr.mxu0 0.0
        %1099 = vmatpush1.msra.mxu0 0.0
        %1100 = vmatprep.subr.mxu0 0.0
        %1101 = vmatpush1.msra.mxu0 0.0
        %1102 = vmatprep.subr.mxu0 0.0
        %1103 = vmatpush1.msra.mxu0 0.0
        %1104 = vmatprep.subr.mxu0 0.0
        %1105 = vmatpush1.msra.mxu0 0.0
        %1106 = vmatprep.subr.mxu0 0.0
        %1107 = vmatpush1.msra.mxu0 0.0
        %1108 = vmatprep.mubr.f32.mxu0 0.0
        %v1109 = vand.u32 %v182, 4294901760
        %1110 = vmatmul.mubr.f32.gmra.mrb[0].mxu0 %v1109
        %v1111 = vpop.f32.mrb[0].mxu0
        %v1112 = vadd.f32 %v1025, %v1111
        %v1113 = vpop.f32.mrb[0].mxu0
        %1114 = vdwg.mxu0
        %v1115 = vlaneseq
        %v1116 = vand.u32 %v1115, 127
        %vm1117 = vcmp.eq.s32.totalorder %v1116, 0
        %v1118 = vsel %vm1117, %v1112, 0.0
        %vm1119 = vcmask 23552
        %v1120 = vsel %vm1119, %v1118, 0.0
        %1121 = vadd.xlane.f32.xlu0 %v1120
        %v1122 = vpop.xlane.xlu0 %1121
        %vm1123 = vcmp.gt.f32.partialorder %v1122, 0.0
        %v1124 = vsel %vm1123, 1, 0
        %v1125 = vadd.s32 %v1124, 1
        %vm1126 = vcmp.eq.s32.totalorder %v1116, %v1125
        %v1127 = vsel %vm1126, %v1112, 0.0
        %v1128 = vsel %vm1119, %v1127, 0.0
        %1129 = vadd.xlane.f32.xlu0 %v1128
        %v1130 = vpop.xlane.xlu0 %1129
        %vm1131 = vcmp.gt.f32.partialorder %v1130, 0.0
        %v1132 = vsel %vm1131, 1, 0
        %v1133 = vmul.u32 %v1125, 2
        %v1134 = vadd.s32 %v1133, 1
        %v1135 = vadd.s32 %v1134, %v1132
        %v1136 = vsub.s32 %v1135, 3
        %vm1137 = vcmp.eq.s32.totalorder %v1136, 1
        %v1138 = vsel %vm1137, 1, 0
        %vm1139 = vcmp.eq.s32.totalorder %v1138, 1
        %v1140 = vsel %vm1139, %v413, %v411
        %vm1141 = vcmp.eq.s32.totalorder %v1136, 2
        %v1142 = vsel %vm1141, 1, 0
        %vm1143 = vcmp.eq.s32.totalorder %v1142, 1
        %v1144 = vsel %vm1143, %v452, %v1140
        %vm1145 = vcmp.eq.s32.totalorder %v1136, 3
        %v1146 = vsel %vm1145, 1, 0
        %vm1147 = vcmp.eq.s32.totalorder %v1146, 1
        %v1148 = vsel %vm1147, %v454, %v1144
        %1149 = vst [vmem:[%s176] sm:$0xff] %v1148
        %s1150 = sand.u32 %s94, 1
        %s1151 = scalar_lea.sflag [#allocation4], %s1150
        %s1152 = sand.u32 %s94, 1
        %s1153 = smul.addr %s1152, 8
        %s1154 = scalar_lea.vmem [#allocation5], %s1153
        // Predicated region
        $region37: #{cond_mm_packed.1} parent=31 // pred_check
          %p1155 = pneg %p104
        $region38: #{cond_mm_packed.1} parent=31 // pred_check_branch
          %1157 = sbr.rel (%p1155) target = $region40
        $region39: #{cond_mm_packed.1} parent=31 // pred_region
          %s1159 = ssub.s32 128, 128
          %1160 = vsyncadd %s1151, %s1159
          %s1161 = smul.addr %s18, 128
          %s1162 = scalar_lea.hbm %s3, %s1161
          %s1164 = sshll.u32 %s1154, 4
          %s1165 = int_to_ptr.vmem [resolvable:$true] %s1164
          %1167 = dma.vmem_to_hbm [thread:$0]  %s1165, 128, %s1162, %s1151
        $region40: #{cond_mm_packed.1} parent=31 // pred_fallthru
          _
      $region32: #{cond_mm_packed.1} parent=5 // pred_fallthru
        _
      %p1168 = scmp.le.s32.totalorder 2, %s13
      // Predicated region
      $region41: #{cond_mm_packed.1} parent=5 // pred_check
        %p1169 = pneg %p1168
      $region42: #{cond_mm_packed.1} parent=5 // pred_check_branch
        %1171 = sbr.rel (%p1169) target = $region44
      $region43: #{cond_mm_packed.1} parent=5 // pred_region
        %s1172 = ssub.s32 %s13, 2
        // Predicated region
        $region45: #{cond_mm_packed.1} parent=43 // pred_check
          %p1173 = pneg %p110
        $region46: #{cond_mm_packed.1} parent=43 // pred_check_branch
          %1175 = sbr.rel (%p1173) target = $region48
        $region47: #{cond_mm_packed.1} parent=43 // pred_region
          %s1176 = sand.u32 %s95, 1
          %s1177 = scalar_lea.sflag [#allocation4], %s1176
          %s1178 = sand.u32 %s95, 1
          %s1179 = smul.addr %s1178, 8
          %s1180 = scalar_lea.vmem [#allocation5], %s1179
          %1181 = dma.done %s1177, 128
        $region48: #{cond_mm_packed.1} parent=43 // pred_fallthru
          _
      $region44: #{cond_mm_packed.1} parent=5 // pred_fallthru
        _
    $region6: #{cond_mm_packed.1} parent=1 // loop_footer
      %s17 = sadd.s32 1, %s13
    $region7: #{cond_mm_packed.1} parent=1 // loop_footer_branch
      %12 = sbr.rel target = $region3
    $region8: #{cond_mm_packed.1} parent=1 // loop_exit
      _
    %1182 = vsyncpa [#allocation3], 1
    %s1183 = scalar_lea.sflag [#allocation3], 1
    %1184 = vsyncpa %s1183, 1
    %1185 = vsyncpa [#allocation4], 1
    %s1186 = scalar_lea.sflag [#allocation4], 1
    %1187 = vsyncpa %s1186, 1

</llo_original>
